<compile_context>
chip_gen: v6e
topology: v6e:2x2x1
jax: 0.10.0
libtpu: 0.0.40
codegen_flags: <defaults>
</compile_context>

<pallas_src>
import jax
import jax.numpy as jnp
from jax.experimental import pallas as pl
from jax.experimental.pallas import tpu as pltpu

SUB = 0.46
MAXV = 7.5

_LANE_WIDTH = 512      # lane-dense last dim (multiple of 128)
_MAX_ROW_TILE = 1024   # 1024 x 512 x 4B = 2 MiB per buffer


def _light_relu_kernel(x_ref, o_ref):
    # Compute in f32 regardless of input dtype, cast back only on store.
    x = x_ref[...].astype(jnp.float32)
    y = x * jnp.tanh(x)          # tanh -> EUP slot; mul/sub/min -> VPU
    y = y - SUB
    y = jnp.minimum(y, MAXV)
    o_ref[...] = y.astype(o_ref.dtype)


def light_relu(x):
    """Elementwise LightRelu. Accepts any shape (e.g. NCHW)."""
    orig_shape = x.shape
    orig_dtype = x.dtype
    total = x.size

    w = _LANE_WIDTH
    rows = pl.cdiv(total, w)
    padded_total = rows * w

    x_flat = jnp.reshape(x, (total,))
    if padded_total != total:
        # Only pad up to a multiple of the lane width; anything already
        # divisible by 512 takes a zero-copy reshape path.
        x_flat = jnp.pad(x_flat, (0, padded_total - total))
    x2d = jnp.reshape(x_flat, (rows, w))

    # Row tile: big fixed tile (multiple of 8/16 so the (8,128) layout rule
    # holds) for large inputs; for small inputs one block equal to the full
    # array is always legal.  A ragged last block is masked by Pallas.
    if rows >= _MAX_ROW_TILE:
        row_tile = _MAX_ROW_TILE
    else:
        row_tile = rows

    grid = (pl.cdiv(rows, row_tile),)

    out2d = pl.pallas_call(
        _light_relu_kernel,
        out_shape=jax.ShapeDtypeStruct((rows, w), orig_dtype),
        grid_spec=pltpu.PrefetchScalarGridSpec(
            num_scalar_prefetch=0,
            grid=grid,
            in_specs=[pl.BlockSpec((row_tile, w), lambda i: (i, 0))],
            out_specs=pl.BlockSpec((row_tile, w), lambda i: (i, 0)),
        ),
        compiler_params=pltpu.CompilerParams(
            dimension_semantics=("parallel",),
        ),
    )(x2d)

    out_flat = jnp.reshape(out2d, (padded_total,))
    if padded_total != total:
        out_flat = out_flat[:total]
    return jnp.reshape(out_flat, orig_shape)


def _light_relu_ref(x):
    y = x.astype(jnp.float32)
    y = y * jnp.tanh(y)
    y = y - SUB
    y = jnp.minimum(y, MAXV)
    return y.astype(x.dtype)


if __name__ == "__main__":
    key = jax.random.PRNGKey(0)
    # NCHW input, small shape: batch=2, channels=4, spatial=16x16
    x = jax.random.normal(key, (2, 4, 16, 16), dtype=jnp.float32) * 3.0

    out = light_relu(x)
    out = jax.block_until_ready(out)

    ref = _light_relu_ref(x)
    assert out.shape == x.shape and out.dtype == x.dtype
    assert jnp.allclose(out, ref, atol=1e-5, rtol=1e-5)
    print("KERNEL_OK")
</pallas_src>

<mosaic_0001>
module attributes {stable_mosaic.version = 11 : i64} {
  func.func @_light_relu_kernel(%arg0: i32, %arg1: memref<4x512xf32, #tpu.memory_space<vmem>>, %arg2: memref<4x512xf32, #tpu.memory_space<vmem>>) attributes {dimension_semantics = [#tpu.dimension_semantics<parallel>], iteration_bounds = array<i64: 1>, scalar_prefetch = 0 : i64, scratch_operands = 0 : i64, tpu.core_type = #tpu.core_type<tc>, window_params = [{transform_indices = @transform_0, window_bounds = array<i64: 4, 512>}, {transform_indices = @transform_1, window_bounds = array<i64: 4, 512>}]} {
    %c0 = arith.constant 0 : index
    %c0_0 = arith.constant 0 : index
    %0 = vector.load %arg1[%c0, %c0_0] : memref<4x512xf32, #tpu.memory_space<vmem>>, vector<4x512xf32>
    %1 = math.tanh %0 : vector<4x512xf32>
    %2 = arith.mulf %0, %1 : vector<4x512xf32>
    %cst = arith.constant 4.600000e-01 : f32
    %3 = vector.broadcast %cst : f32 to vector<4x512xf32>
    %4 = arith.subf %2, %3 : vector<4x512xf32>
    %cst_1 = arith.constant 7.500000e+00 : f32
    %5 = vector.broadcast %cst_1 : f32 to vector<4x512xf32>
    %6 = arith.minimumf %4, %5 : vector<4x512xf32>
    %c0_2 = arith.constant 0 : index
    %c0_3 = arith.constant 0 : index
    %7 = vector.load %arg2[%c0_2, %c0_3] : memref<4x512xf32, #tpu.memory_space<vmem>>, vector<4x512xf32>
    tpu.vector_store %arg2[%c0_2, %c0_3], %6 {strides = array<i32>} : memref<4x512xf32, #tpu.memory_space<vmem>>, vector<4x512xf32>,
    return
  }
  func.func @transform_0(%arg0: i32) -> (i32, i32) {
    %c0_i32 = arith.constant 0 : i32
    %c0_i32_0 = arith.constant 0 : i32
    return %arg0, %c0_i32 : i32, i32
  }
  func.func @transform_1(%arg0: i32) -> (i32, i32) {
    %c0_i32 = arith.constant 0 : i32
    %c0_i32_0 = arith.constant 0 : i32
    return %arg0, %c0_i32 : i32, i32
  }
}

</mosaic_0001>

<llo_original>
// kernel: tpu_custom_call.1
$region0: #{tpu_custom_call.1}
  #allocation0 [shape = 'u32[]', space=smem, size = 0x4, offset = 0x4, fixed_abs, tag = 'smem constant byte address 0x4 - core index']
  #allocation1 [shape = 'u32[144,128]{1,0:T(1,128)}', space=vmem, size = 0x12000, scoped, tag = 'internal scratch']
  %s0 = inlined_call_operand.hbm [shape: f32[4,512], index: 0, kind: input, shape index: {}]
  %s1 = inlined_call_operand.hbm [shape: f32[4,512], index: 1, kind: output, shape index: {}]
  %s2 = sld [smem:[#allocation0]]
  $region18: #{tpu_custom_call.1} parent=0
    _
  %s4 = ssub.s32 1, %s2
  %s5 = scalar_select 0, %s4, %s2
  $region1: #{tpu_custom_call.1} parent=0
    #allocation2 [shape = 'u8[8192]{0}', space=vmem, size = 0x2000, scoped, tag = 'input window, operand 0, single buffered']
    #allocation3 [shape = 's32[1]{0}', space=sflag, size = 0x4, scoped, tag = 'scoped memory for tpu_custom_call.1']
    #allocation4 [shape = 's32[1]{0}', space=sflag, size = 0x4, scoped, tag = 'scoped memory for tpu_custom_call.1']
    #allocation5 [shape = 'u8[8192]{0}', space=vmem, size = 0x2000, scoped, tag = 'output window, operand 0, single buffered']
    %6 = vsyncpa [#allocation3], 0
    %7 = vsyncpa [#allocation4], 0
    // Predicated region
    $region2: #{tpu_custom_call.1} parent=1 // pred_check
      _
    $region3: #{tpu_custom_call.1} parent=1 // pred_check_branch
      %9 = sbr.rel (0) target = $region5
    $region4: #{tpu_custom_call.1} parent=1 // pred_region
      %s11 = ssub.s32 256, 256
      %12 = vsyncadd [#allocation3], %s11
      %s14 = sshll.u32 [#allocation2], 4
      %s15 = int_to_ptr.vmem [resolvable:$true] %s14
      %17 = dma.hbm_to_vmem [thread:$0]  %s0, 256, %s15, [#allocation3]
    $region5: #{tpu_custom_call.1} parent=1 // pred_fallthru
      _
    // Predicated region
    $region6: #{tpu_custom_call.1} parent=1 // pred_check
      _
    $region7: #{tpu_custom_call.1} parent=1 // pred_check_branch
      %19 = sbr.rel (0) target = $region9
    $region8: #{tpu_custom_call.1} parent=1 // pred_region
      %20 = dma.done [#allocation3], 256
    $region9: #{tpu_custom_call.1} parent=1 // pred_fallthru
      _
    %v21 = vld [vmem:[#allocation2] sm:$0xff]
    %v22 = vld [vmem:[#allocation2 + $0x8] sm:$0xff]
    %v23 = vtanh.pop %v21
    %v24 = vtanh.pop %v22
    %v25 = vmul.f32 %v21, %v23
    %v26 = vmul.f32 %v22, %v24
    %v27 = vsub.f32 %v25, 0.46
    %v28 = vsub.f32 %v26, 0.46
    %v29 = vmin.f32 %v27, 7.5
    %v30 = vmin.f32 %v28, 7.5
    %31 = vst [vmem:[#allocation5] sm:$0xff] %v29
    %32 = vst [vmem:[#allocation5 + $0x8] sm:$0xff] %v30
    // Predicated region
    $region10: #{tpu_custom_call.1} parent=1 // pred_check
      _
    $region11: #{tpu_custom_call.1} parent=1 // pred_check_branch
      %34 = sbr.rel (0) target = $region13
    $region12: #{tpu_custom_call.1} parent=1 // pred_region
      %s36 = ssub.s32 256, 256
      %37 = vsyncadd [#allocation4], %s36
      %s39 = sshll.u32 [#allocation5], 4
      %s40 = int_to_ptr.vmem [resolvable:$true] %s39
      %42 = dma.vmem_to_hbm [thread:$0]  %s40, 256, %s1, [#allocation4]
    $region13: #{tpu_custom_call.1} parent=1 // pred_fallthru
      _
    // Predicated region
    $region14: #{tpu_custom_call.1} parent=1 // pred_check
      _
    $region15: #{tpu_custom_call.1} parent=1 // pred_check_branch
      %44 = sbr.rel (0) target = $region17
    $region16: #{tpu_custom_call.1} parent=1 // pred_region
      %45 = dma.done [#allocation4], 256
    $region17: #{tpu_custom_call.1} parent=1 // pred_fallthru
      _
    %46 = vsyncpa [#allocation3], 1
    %47 = vsyncpa [#allocation4], 1

</llo_original>
